<compile_context>
chip_gen: v5e
topology: v5e:2x2
jax: 0.10.0
libtpu: 0.0.40
codegen_flags: <defaults>
</compile_context>

<pallas_src>
import functools

import jax
import jax.numpy as jnp
from jax.experimental import pallas as pl
from jax.experimental.pallas import tpu as pltpu


NUM_SPLITS = 2          # leading "parallel" grid axis (uses both TCs on v7x; harmless on 1-TC chips)
_OUT_SUB = 8            # output accumulator block is (8, 128) to satisfy (8,128) tiling


def _round_up(x: int, m: int) -> int:
    return ((x + m - 1) // m) * m


def _choose_tile_rows(batch: int, d_pad: int, itemsize: int) -> int:
    """Largest row tile (multiple of 8, <=1024) whose double-buffered input
    footprint (2 inputs x 2 buffers) stays within ~24 MiB of VMEM."""
    budget_bytes = 24 * 1024 * 1024
    per_row = d_pad * itemsize
    tb_budget = max(8, ((budget_bytes // (4 * per_row)) // 8) * 8)
    tb_need = _round_up(max(1, -(-batch // NUM_SPLITS)), 8)   # don't tile bigger than needed
    return max(8, min(1024, tb_budget, tb_need))


def _contrastive_kernel(o1_ref, o2_ref, lab_ref, out_ref, *, margin: float):
    i = pl.program_id(1)

    @pl.when(i == 0)
    def _init():
        out_ref[...] = jnp.zeros_like(out_ref)

    # Upcast inside the kernel (inputs stream in native dtype).
    o1 = o1_ref[...].astype(jnp.float32)                     # [TB, Dp]
    o2 = o2_ref[...].astype(jnp.float32)                     # [TB, Dp]
    diff = o1 - o2
    d = jnp.sum(diff * diff, axis=1, keepdims=True)          # [TB, 1] squared distance
    lab = lab_ref[...]                                       # [TB, 1] float32
    hinge = jnp.maximum(margin - d, 0.0)
    per_sample = (1.0 - lab) * d + lab * hinge               # [TB, 1]; padded rows -> 0
    block_sum = jnp.sum(per_sample)                          # scalar partial sum

    # Accumulate the running partial sum for this split (resident in VMEM across i).
    out_ref[...] = out_ref[...] + block_sum


def contrastive_loss(output1: jax.Array, output2: jax.Array,
                     label: jax.Array, margin: float) -> jax.Array:
    """Pallas TPU implementation of ContrastiveLoss.forward."""
    assert output1.shape == output2.shape and output1.ndim == 2
    B, D = output1.shape

    # Lane-dense feature dim.
    Dp = _round_up(max(D, 1), 128)
    itemsize = jnp.dtype(output1.dtype).itemsize
    TB = _choose_tile_rows(B, Dp, itemsize)
    chunk = NUM_SPLITS * TB
    Bp = _round_up(B, chunk)
    n_tiles = Bp // chunk

    lab = label.reshape(B).astype(jnp.float32)
    pad_rows, pad_cols = Bp - B, Dp - D
    if pad_rows or pad_cols:
        # Zero padding contributes exactly 0 to the loss sum (d=0, label=0).
        output1 = jnp.pad(output1, ((0, pad_rows), (0, pad_cols)))
        output2 = jnp.pad(output2, ((0, pad_rows), (0, pad_cols)))
        lab = jnp.pad(lab, (0, pad_rows))
    lab = lab.reshape(Bp, 1)

    kernel = functools.partial(_contrastive_kernel, margin=float(margin))

    row_block = lambda c, i: (c * n_tiles + i, 0)

    out = pl.pallas_call(
        kernel,
        out_shape=jax.ShapeDtypeStruct((NUM_SPLITS * _OUT_SUB, 128), jnp.float32),
        grid=(NUM_SPLITS, n_tiles),
        in_specs=[
            pl.BlockSpec((TB, Dp), row_block),   # output1 tile
            pl.BlockSpec((TB, Dp), row_block),   # output2 tile
            pl.BlockSpec((TB, 1), row_block),    # label tile
        ],
        # Same block across the "arbitrary" axis -> per-split accumulator in VMEM,
        # written back to HBM only once per split.
        out_specs=pl.BlockSpec((_OUT_SUB, 128), lambda c, i: (c, 0)),
        compiler_params=pltpu.CompilerParams(
            dimension_semantics=("parallel", "arbitrary"),
            vmem_limit_bytes=48 * 1024 * 1024,
        ),
    )(output1, output2, lab)

    # Each (8,128) block holds its split's partial sum broadcast; pick one lane per split.
    partials = out.reshape(NUM_SPLITS, _OUT_SUB, 128)[:, 0, 0]
    return jnp.sum(partials) / B


def _reference_loss(output1, output2, label, margin):
    o1 = output1.astype(jnp.float32)
    o2 = output2.astype(jnp.float32)
    d = jnp.sum((o1 - o2) ** 2, axis=1)
    return jnp.mean((1.0 - label) * d + label * jnp.maximum(margin - d, 0.0))


if __name__ == "__main__":
    key = jax.random.PRNGKey(0)
    k1, k2, k3 = jax.random.split(key, 3)

    B, D = 8, 32
    margin = 2.0

    output1 = jax.random.normal(k1, (B, D), dtype=jnp.float32)
    output2 = jax.random.normal(k2, (B, D), dtype=jnp.float32)
    label = jax.random.bernoulli(k3, 0.5, (B,)).astype(jnp.float32)

    loss = contrastive_loss(output1, output2, label, margin)
    loss = jax.block_until_ready(loss)

    ref = _reference_loss(output1, output2, label, margin)
    assert jnp.allclose(loss, ref, rtol=1e-5, atol=1e-5), (loss, ref)

    print("KERNEL_OK")
</pallas_src>

<mosaic_0001>
module attributes {stable_mosaic.version = 11 : i64} {
  func.func @_contrastive_kernel(%arg0: i32, %arg1: i32, %arg2: memref<8x128xf32, #tpu.memory_space<vmem>>, %arg3: memref<8x128xf32, #tpu.memory_space<vmem>>, %arg4: memref<8x1xf32, #tpu.memory_space<vmem>>, %arg5: memref<8x128xf32, #tpu.memory_space<vmem>>) attributes {dimension_semantics = [#tpu.dimension_semantics<parallel>, #tpu.dimension_semantics<arbitrary>], iteration_bounds = array<i64: 2, 1>, scalar_prefetch = 0 : i64, scratch_operands = 0 : i64, tpu.core_type = #tpu.core_type<tc>, window_params = [{transform_indices = @transform_0, window_bounds = array<i64: 8, 128>}, {transform_indices = @transform_1, window_bounds = array<i64: 8, 128>}, {transform_indices = @transform_2, window_bounds = array<i64: 8, 1>}, {transform_indices = @transform_3, window_bounds = array<i64: 8, 128>}]} {
    %c0_i32 = arith.constant 0 : i32
    %0 = arith.cmpi eq, %arg1, %c0_i32 : i32
    %1 = arith.extui %0 : i1 to i32
    %c0_i32_0 = arith.constant 0 : i32
    %2 = arith.cmpi ne, %1, %c0_i32_0 : i32
    scf.if %2 {
      %cst_14 = arith.constant 0.000000e+00 : f32
      %27 = vector.broadcast %cst_14 : f32 to vector<8x128xf32>
      %c0_15 = arith.constant 0 : index
      %c0_16 = arith.constant 0 : index
      %28 = vector.load %arg5[%c0_15, %c0_16] : memref<8x128xf32, #tpu.memory_space<vmem>>, vector<8x128xf32>
      tpu.vector_store %arg5[%c0_15, %c0_16], %27 {strides = array<i32>} : memref<8x128xf32, #tpu.memory_space<vmem>>, vector<8x128xf32>,
    } else {
    }
    %c0 = arith.constant 0 : index
    %c0_1 = arith.constant 0 : index
    %3 = vector.load %arg2[%c0, %c0_1] : memref<8x128xf32, #tpu.memory_space<vmem>>, vector<8x128xf32>
    %c0_2 = arith.constant 0 : index
    %c0_3 = arith.constant 0 : index
    %4 = vector.load %arg3[%c0_2, %c0_3] : memref<8x128xf32, #tpu.memory_space<vmem>>, vector<8x128xf32>
    %5 = arith.subf %3, %4 : vector<8x128xf32>
    %6 = arith.mulf %5, %5 : vector<8x128xf32>
    %cst = arith.constant dense<0.000000e+00> : vector<8xf32>
    %7 = vector.multi_reduction <add>, %6, %cst [1] : vector<8x128xf32> to vector<8xf32>
    %8 = vector.shape_cast %7 : vector<8xf32> to vector<8x1xf32>
    %c0_4 = arith.constant 0 : index
    %c0_5 = arith.constant 0 : index
    %9 = vector.load %arg4[%c0_4, %c0_5] : memref<8x1xf32, #tpu.memory_space<vmem>>, vector<8x1xf32>
    %cst_6 = arith.constant 2.000000e+00 : f32
    %10 = vector.broadcast %cst_6 : f32 to vector<8x1xf32>
    %11 = arith.subf %10, %8 : vector<8x1xf32>
    %cst_7 = arith.constant 0.000000e+00 : f32
    %12 = vector.broadcast %cst_7 : f32 to vector<8x1xf32>
    %13 = arith.maximumf %11, %12 : vector<8x1xf32>
    %cst_8 = arith.constant 1.000000e+00 : f32
    %14 = vector.broadcast %cst_8 : f32 to vector<8x1xf32>
    %15 = arith.subf %14, %9 : vector<8x1xf32>
    %16 = arith.mulf %15, %8 : vector<8x1xf32>
    %17 = arith.mulf %9, %13 : vector<8x1xf32>
    %18 = arith.addf %16, %17 : vector<8x1xf32>
    %19 = vector.shape_cast %18 : vector<8x1xf32> to vector<1x8x1xf32>
    %cst_9 = arith.constant dense<0.000000e+00> : vector<1xf32>
    %20 = vector.multi_reduction <add>, %19, %cst_9 [1, 2] : vector<1x8x1xf32> to vector<1xf32>
    %21 = vector.shape_cast %20 : vector<1xf32> to vector<1x1x1xf32>
    %22 = vector.extract %21[0, 0, 0] : f32 from vector<1x1x1xf32>
    %c0_10 = arith.constant 0 : index
    %c0_11 = arith.constant 0 : index
    %23 = vector.load %arg5[%c0_10, %c0_11] : memref<8x128xf32, #tpu.memory_space<vmem>>, vector<8x128xf32>
    %24 = vector.broadcast %22 : f32 to vector<8x128xf32>
    %25 = arith.addf %23, %24 : vector<8x128xf32>
    %c0_12 = arith.constant 0 : index
    %c0_13 = arith.constant 0 : index
    %26 = vector.load %arg5[%c0_12, %c0_13] : memref<8x128xf32, #tpu.memory_space<vmem>>, vector<8x128xf32>
    tpu.vector_store %arg5[%c0_12, %c0_13], %25 {strides = array<i32>} : memref<8x128xf32, #tpu.memory_space<vmem>>, vector<8x128xf32>,
    return
  }
  func.func @transform_0(%arg0: i32, %arg1: i32) -> (i32, i32) {
    %c1_i32 = arith.constant 1 : i32
    %0 = arith.muli %arg0, %c1_i32 : i32
    %1 = arith.addi %0, %arg1 : i32
    %c0_i32 = arith.constant 0 : i32
    %c0_i32_0 = arith.constant 0 : i32
    return %1, %c0_i32 : i32, i32
  }
  func.func @transform_1(%arg0: i32, %arg1: i32) -> (i32, i32) {
    %c1_i32 = arith.constant 1 : i32
    %0 = arith.muli %arg0, %c1_i32 : i32
    %1 = arith.addi %0, %arg1 : i32
    %c0_i32 = arith.constant 0 : i32
    %c0_i32_0 = arith.constant 0 : i32
    return %1, %c0_i32 : i32, i32
  }
  func.func @transform_2(%arg0: i32, %arg1: i32) -> (i32, i32) {
    %c1_i32 = arith.constant 1 : i32
    %0 = arith.muli %arg0, %c1_i32 : i32
    %1 = arith.addi %0, %arg1 : i32
    %c0_i32 = arith.constant 0 : i32
    %c0_i32_0 = arith.constant 0 : i32
    return %1, %c0_i32 : i32, i32
  }
  func.func @transform_3(%arg0: i32, %arg1: i32) -> (i32, i32) {
    %c0_i32 = arith.constant 0 : i32
    %c0_i32_0 = arith.constant 0 : i32
    return %arg0, %c0_i32 : i32, i32
  }
}

</mosaic_0001>

<llo_original>
// kernel: tpu_custom_call.1
$region0: #{tpu_custom_call.1}
  #allocation0 [shape = 'u32[]', space=smem, size = 0x4, offset = 0x4, fixed_abs, tag = 'smem constant byte address 0x4 - core index']
  #allocation1 [shape = 'u32[72,128]{1,0:T(1,128)}', space=vmem, size = 0x9000, scoped, tag = 'internal scratch']
  %s0 = inlined_call_operand.vmem [shape: f32[16,128], index: 0, kind: input, shape index: {}]
  %s1 = inlined_call_operand.hbm [shape: f32[16,128], index: 1, kind: input, shape index: {}]
  %s2 = inlined_call_operand.vmem [shape: f32[16,1], index: 2, kind: input, shape index: {}]
  %s3 = inlined_call_operand.hbm [shape: f32[16,128], index: 3, kind: output, shape index: {}]
  %s4 = sld [smem:[#allocation0]]
  $region53: #{tpu_custom_call.1} parent=0
    _
  %s6 = ssub.s32 1, %s4
  %s7 = scalar_select 0, %s6, %s4
  $region1: #{tpu_custom_call.1} parent=0
    #allocation2 [shape = 'u8[8192]{0}', space=vmem, size = 0x2000, scoped, tag = 'input window, operand 1']
    #allocation3 [shape = 's32[2]{0}', space=sflag, size = 0x8, scoped, tag = 'scoped memory for tpu_custom_call.1']
    #allocation4 [shape = 's32[2]{0}', space=sflag, size = 0x8, scoped, tag = 'scoped memory for tpu_custom_call.1']
    #allocation5 [shape = 'u8[8192]{0}', space=vmem, size = 0x2000, scoped, tag = 'output window, operand 0']
    %8 = vsyncpa [#allocation3], 0
    %s9 = scalar_lea.sflag [#allocation3], 1
    %10 = vsyncpa %s9, 0
    %11 = vsyncpa [#allocation4], 0
    %s12 = scalar_lea.sflag [#allocation4], 1
    %13 = vsyncpa %s12, 0
    loop: start=0, step=1, limit=4
    $region2: #{tpu_custom_call.1} parent=1 // loop_pre_header
      _
    $region3: #{tpu_custom_call.1} parent=1 // loop_header
      %s15 = sphi 0, %s19
      %p16 = scmp.ge.s32.totalorder %s15, 4
      %s22 = sphi 0, %s34
      %s23 = sphi 0, %s30
      %s24 = sphi 0, %s22
      %s25 = sphi 0, %s23
      %s26 = sphi 0, %s24
      %s27 = sphi 0, %s25
      %s39 = sphi 0, %s41
      %s42 = sphi 0, %s39
      %s43 = sphi 0, %s42
      %s59 = sphi 0, %s43
      %s67 = sphi 0, %s69
      %s70 = sphi 0, %s67
      %s71 = sphi 0, %s70
      %s87 = sphi 0, %s71
      %s95 = sphi 0, %s97
      %s98 = sphi 0, %s95
      %s99 = sphi 0, %s98
      %s115 = sphi 0, %s99
      %s121 = sphi 0, %s123
      %s124 = sphi 0, %s121
      %s125 = sphi 0, %s124
      %s141 = sphi 0, %s125
    $region4: #{tpu_custom_call.1} parent=1 // loop_header_branch
      %18 = sbr.rel (%p16) target = $region8
    $region5: #{tpu_custom_call.1} parent=1 // loop_body
      %s20 = ssub.s32 %s15, 1
      %s21 = ssub.s32 %s15, 2
      %s28 = sadd.s32 1, %s23
      %p29 = scmp.ge.s32.totalorder %s28, 1
      %s30 = scalar_select %p29, 0, %s28
      %s31 = sadd.s32 1, %s22
      %s32 = scalar_select %p29, %s31, %s22
      %p33 = scmp.ge.s32.totalorder %s32, 2
      %s34 = scalar_select %p33, 0, %s32
      %s35 = sadd.s32 %s22, %s23
      %s36 = sadd.s32 %s34, %s30
      %s37 = ssub.s32 %s35, %s36
      %p38 = scmp.eq.s32.totalorder %s37, 0
      %s40 = sadd.s32 %s39, 1
      %s41 = scalar_select %p38, %s39, %s40
      %p44 = pneg %p38
      %p45 = scmp.eq.s32.totalorder %s15, 1
      %p46 = por %p44, %p45
      %p47 = scmp.ne.s32.totalorder %s39, %s42
      %p48 = scmp.eq.s32.totalorder %s15, 0
      %p49 = por %p47, %p48
      %p50 = scmp.ne.s32.totalorder %s39, %s42
      %p51 = scmp.eq.s32.totalorder %s20, 1
      %p52 = por %p50, %p51
      %p53 = scmp.ne.s32.totalorder %s42, %s43
      %p54 = scmp.eq.s32.totalorder %s20, 0
      %p55 = por %p53, %p54
      %p56 = scmp.ne.s32.totalorder %s42, %s43
      %p57 = scmp.eq.s32.totalorder %s21, 1
      %p58 = por %p56, %p57
      %p60 = scmp.ne.s32.totalorder %s43, %s59
      %p61 = scmp.eq.s32.totalorder %s21, 0
      %p62 = por %p60, %p61
      %s63 = sadd.s32 %s22, %s23
      %s64 = sadd.s32 %s34, %s30
      %s65 = ssub.s32 %s63, %s64
      %p66 = scmp.eq.s32.totalorder %s65, 0
      %s68 = sadd.s32 %s67, 1
      %s69 = scalar_select %p66, %s67, %s68
      %p72 = pneg %p66
      %p73 = scmp.eq.s32.totalorder %s15, 1
      %p74 = por %p72, %p73
      %p75 = scmp.ne.s32.totalorder %s67, %s70
      %p76 = scmp.eq.s32.totalorder %s15, 0
      %p77 = por %p75, %p76
      %p78 = scmp.ne.s32.totalorder %s67, %s70
      %p79 = scmp.eq.s32.totalorder %s20, 1
      %p80 = por %p78, %p79
      %p81 = scmp.ne.s32.totalorder %s70, %s71
      %p82 = scmp.eq.s32.totalorder %s20, 0
      %p83 = por %p81, %p82
      %p84 = scmp.ne.s32.totalorder %s70, %s71
      %p85 = scmp.eq.s32.totalorder %s21, 1
      %p86 = por %p84, %p85
      %p88 = scmp.ne.s32.totalorder %s71, %s87
      %p89 = scmp.eq.s32.totalorder %s21, 0
      %p90 = por %p88, %p89
      %s91 = sadd.s32 %s22, %s23
      %s92 = sadd.s32 %s34, %s30
      %s93 = ssub.s32 %s91, %s92
      %p94 = scmp.eq.s32.totalorder %s93, 0
      %s96 = sadd.s32 %s95, 1
      %s97 = scalar_select %p94, %s95, %s96
      %p100 = pneg %p94
      %p101 = scmp.eq.s32.totalorder %s15, 1
      %p102 = por %p100, %p101
      %p103 = scmp.ne.s32.totalorder %s95, %s98
      %p104 = scmp.eq.s32.totalorder %s15, 0
      %p105 = por %p103, %p104
      %p106 = scmp.ne.s32.totalorder %s95, %s98
      %p107 = scmp.eq.s32.totalorder %s20, 1
      %p108 = por %p106, %p107
      %p109 = scmp.ne.s32.totalorder %s98, %s99
      %p110 = scmp.eq.s32.totalorder %s20, 0
      %p111 = por %p109, %p110
      %p112 = scmp.ne.s32.totalorder %s98, %s99
      %p113 = scmp.eq.s32.totalorder %s21, 1
      %p114 = por %p112, %p113
      %p116 = scmp.ne.s32.totalorder %s99, %s115
      %p117 = scmp.eq.s32.totalorder %s21, 0
      %p118 = por %p116, %p117
      %s119 = ssub.s32 %s22, %s34
      %p120 = scmp.eq.s32.totalorder %s119, 0
      %s122 = sadd.s32 %s121, 1
      %s123 = scalar_select %p120, %s121, %s122
      %p126 = pneg %p120
      %p127 = scmp.eq.s32.totalorder %s15, 1
      %p128 = por %p126, %p127
      %p129 = scmp.ne.s32.totalorder %s121, %s124
      %p130 = scmp.eq.s32.totalorder %s15, 0
      %p131 = por %p129, %p130
      %p132 = scmp.ne.s32.totalorder %s121, %s124
      %p133 = scmp.eq.s32.totalorder %s20, 1
      %p134 = por %p132, %p133
      %p135 = scmp.ne.s32.totalorder %s124, %s125
      %p136 = scmp.eq.s32.totalorder %s20, 0
      %p137 = por %p135, %p136
      %p138 = scmp.ne.s32.totalorder %s124, %s125
      %p139 = scmp.eq.s32.totalorder %s21, 1
      %p140 = por %p138, %p139
      %p142 = scmp.ne.s32.totalorder %s125, %s141
      %p143 = scmp.eq.s32.totalorder %s21, 0
      %p144 = por %p142, %p143
      %p145 = scmp.le.s32.totalorder 1, %s15
      %p146 = scmp.lt.s32.totalorder %s15, 3
      %p147 = pnand %p145, %p146
      %p148 = pneg %p147
      // Predicated region
      $region9: #{tpu_custom_call.1} parent=5 // pred_check
        _
      $region10: #{tpu_custom_call.1} parent=5 // pred_check_branch
        %150 = sbr.rel (%p147) target = $region12
      $region11: #{tpu_custom_call.1} parent=5 // pred_region
        %s151 = ssub.s32 %s15, 1
      $region12: #{tpu_custom_call.1} parent=5 // pred_fallthru
        _
      %p152 = scmp.lt.s32.totalorder %s15, 2
      // Predicated region
      $region13: #{tpu_custom_call.1} parent=5 // pred_check
        %p153 = pneg %p152
      $region14: #{tpu_custom_call.1} parent=5 // pred_check_branch
        %155 = sbr.rel (%p153) target = $region16
      $region15: #{tpu_custom_call.1} parent=5 // pred_region
        // Predicated region
        $region17: #{tpu_custom_call.1} parent=15 // pred_check
          %p156 = pneg %p49
        $region18: #{tpu_custom_call.1} parent=15 // pred_check_branch
          %158 = sbr.rel (%p156) target = $region20
        $region19: #{tpu_custom_call.1} parent=15 // pred_region
          %s159 = sadd.s32 %s22, %s23
          %p160 = scmp.lt.s32.totalorder %s159, 1
          %s161 = scalar_select %p160, %s159, 1
          %s162 = smul.addr %s161, 8
          %s163 = scalar_lea.vmem %s0, %s162
          %s164 = sadd.s32 %s22, %s23
        $region20: #{tpu_custom_call.1} parent=15 // pred_fallthru
          _
        // Predicated region
        $region21: #{tpu_custom_call.1} parent=15 // pred_check
          %p165 = pneg %p77
        $region22: #{tpu_custom_call.1} parent=15 // pred_check_branch
          %167 = sbr.rel (%p165) target = $region24
        $region23: #{tpu_custom_call.1} parent=15 // pred_region
          %s168 = sand.u32 %s67, 1
          %s169 = scalar_lea.sflag [#allocation3], %s168
          %s170 = sand.u32 %s67, 1
          %s171 = smul.addr %s170, 8
          %s172 = scalar_lea.vmem [#allocation2], %s171
          %s173 = sadd.s32 %s22, %s23
          %175 = vsyncadd %s169, 0
          %s176 = smul.addr %s173, 8
          %s177 = scalar_lea.hbm %s1, %s176
          %s179 = sshll.u32 %s177, 4
          %s180 = int_to_ptr.hbm [resolvable:$true] %s179
          %s181 = sshll.u32 %s172, 4
          %s182 = int_to_ptr.vmem [resolvable:$true] %s181
          %184 = dma.hbm_to_vmem [thread:$0]  %s180, 128, %s182, %s169
        $region24: #{tpu_custom_call.1} parent=15 // pred_fallthru
          _
        // Predicated region
        $region25: #{tpu_custom_call.1} parent=15 // pred_check
          %p185 = pneg %p105
        $region26: #{tpu_custom_call.1} parent=15 // pred_check_branch
          %187 = sbr.rel (%p185) target = $region28
        $region27: #{tpu_custom_call.1} parent=15 // pred_region
          %s188 = sadd.s32 %s22, %s23
          %p189 = scmp.lt.s32.totalorder %s188, 1
          %s190 = scalar_select %p189, %s188, 1
          %s191 = smul.addr %s190, 8
          %s192 = scalar_lea.vmem %s2, %s191
          %s193 = sadd.s32 %s22, %s23
        $region28: #{tpu_custom_call.1} parent=15 // pred_fallthru
          _
      $region16: #{tpu_custom_call.1} parent=5 // pred_fallthru
        _
      %p194 = scmp.le.s32.totalorder 1, %s15
      %p195 = scmp.lt.s32.totalorder %s15, 3
      %p196 = pnand %p194, %p195
      %p197 = pneg %p196
      // Predicated region
      $region29: #{tpu_custom_call.1} parent=5 // pred_check
        _
      $region30: #{tpu_custom_call.1} parent=5 // pred_check_branch
        %199 = sbr.rel (%p196) target = $region32
      $region31: #{tpu_custom_call.1} parent=5 // pred_region
        %s200 = ssub.s32 %s15, 1
        %s201 = sand.u32 %s70, 1
        %s202 = scalar_lea.sflag [#allocation3], %s201
        %s203 = sand.u32 %s70, 1
        %s204 = smul.addr %s203, 8
        %s205 = scalar_lea.vmem [#allocation2], %s204
        // Predicated region
        $region33: #{tpu_custom_call.1} parent=31 // pred_check
          %p206 = pneg %p83
        $region34: #{tpu_custom_call.1} parent=31 // pred_check_branch
          %208 = sbr.rel (%p206) target = $region36
        $region35: #{tpu_custom_call.1} parent=31 // pred_region
          %210 = dma.done %s202, 128
        $region36: #{tpu_custom_call.1} parent=31 // pred_fallthru
          _
        %s211 = sadd.s32 %s24, %s25
        %p212 = scmp.lt.s32.totalorder %s211, 1
        %s213 = scalar_select %p212, %s211, 1
        %s214 = smul.addr %s213, 8
        %s215 = scalar_lea.vmem %s0, %s214
        %p216 = pneg %p55
        %p217 = pneg %p52
        %s218 = sand.u32 %s70, 1
        %s219 = scalar_lea.sflag [#allocation3], %s218
        %s220 = sand.u32 %s70, 1
        %s221 = smul.addr %s220, 8
        %s222 = scalar_lea.vmem [#allocation2], %s221
        %p223 = pneg %p83
        %p224 = pneg %p80
        %s225 = sadd.s32 %s24, %s25
        %p226 = scmp.lt.s32.totalorder %s225, 1
        %s227 = scalar_select %p226, %s225, 1
        %s228 = smul.addr %s227, 8
        %s229 = scalar_lea.vmem %s2, %s228
        %p230 = pneg %p111
        %p231 = pneg %p108
        %p232 = pneg %p137
        %p233 = pneg %p134
        %s234 = sand.u32 %s124, 1
        %s235 = scalar_lea.sflag [#allocation4], %s234
        %s236 = sand.u32 %s124, 1
        %s237 = smul.addr %s236, 8
        %s238 = scalar_lea.vmem [#allocation5], %s237
        %s239 = sadd.s32 %s24, %s25
        %p240 = scmp.lt.s32.totalorder %s239, 1
        %s241 = scalar_select %p240, %s239, 1
        %s242 = smul.addr %s241, 8
        %s243 = scalar_lea.vmem %s0, %s242
        %s244 = sadd.s32 %s24, %s25
        %s245 = sadd.s32 %s24, %s25
        %s246 = sadd.s32 %s24, %s25
        %p247 = scmp.lt.s32.totalorder %s246, 1
        %s248 = scalar_select %p247, %s246, 1
        %s249 = smul.addr %s248, 8
        %s250 = scalar_lea.vmem %s2, %s249
        %s251 = sadd.s32 %s24, %s25
        %p252 = scmp.eq.s32.totalorder %s25, 0
        // Predicated region
        $region37: #{tpu_custom_call.1} parent=31 // pred_check
          %p253 = pneg %p252
        $region38: #{tpu_custom_call.1} parent=31 // pred_check_branch
          %255 = sbr.rel (%p253) target = $region40
        $region39: #{tpu_custom_call.1} parent=31 // pred_region
          %256 = vst [vmem:[%s238] sm:$0xff] 0.0
        $region40: #{tpu_custom_call.1} parent=31 // pred_fallthru
          _
        %v257 = vld [vmem:[%s243] sm:$0xff]
        %v258 = vld [vmem:[%s205] sm:$0xff]
        %v259 = vsub.f32 %v257, %v258
        %v260 = vmul.f32 %v259, %v259
        %261 = vadd.xlane.f32.xlu0 %v260
        %v262 = vpop.xlane.xlu0 %261
        %v263 = vld [vmem:[%s250] sm:$0xff]
        %v264 = vsub.f32 2.0, %v262
        %v265 = vmax.f32 %v264, 0.0
        %v266 = vsub.f32 1.0, %v263
        %v267 = vmul.f32 %v266, %v262
        %v268 = vmul.f32 %v263, %v265
        %v269 = vadd.f32 %v267, %v268
        %vm270 = vcmask 7168
        %v271 = vsel %vm270, %v269, 0.0
        %272 = vadd.xlane.f32.xlu0 %v271
        %v273 = vpop.xlane.xlu0 %272
        %v274 = vrot.slane %v273, 4
        %v275 = vadd.f32 %v273, %v274
        %v276 = vrot.slane %v275, 2
        %v277 = vadd.f32 %v275, %v276
        %v278 = vrot.slane %v277, 1
        %v279 = vadd.f32 %v277, %v278
        %s280 = vtos %v279
        %v281 = vld [vmem:[%s238] sm:$0xff]
        %v282 = vstv %s280
        %v283 = vadd.f32 %v281, %v282
        %284 = vst [vmem:[%s238] sm:$0xff] %v283
        %s285 = sand.u32 %s124, 1
        %s286 = scalar_lea.sflag [#allocation4], %s285
        %s287 = sand.u32 %s124, 1
        %s288 = smul.addr %s287, 8
        %s289 = scalar_lea.vmem [#allocation5], %s288
        // Predicated region
        $region41: #{tpu_custom_call.1} parent=31 // pred_check
          %p290 = pneg %p134
        $region42: #{tpu_custom_call.1} parent=31 // pred_check_branch
          %292 = sbr.rel (%p290) target = $region44
        $region43: #{tpu_custom_call.1} parent=31 // pred_region
          %294 = vsyncadd %s286, 0
          %s295 = smul.addr %s24, 8
          %s296 = scalar_lea.hbm %s3, %s295
          %s298 = sshll.u32 %s289, 4
          %s299 = int_to_ptr.vmem [resolvable:$true] %s298
          %s300 = sshll.u32 %s296, 4
          %s301 = int_to_ptr.hbm [resolvable:$true] %s300
          %303 = dma.vmem_to_hbm [thread:$0]  %s299, 128, %s301, %s286
        $region44: #{tpu_custom_call.1} parent=31 // pred_fallthru
          _
      $region32: #{tpu_custom_call.1} parent=5 // pred_fallthru
        _
      %p304 = scmp.le.s32.totalorder 2, %s15
      // Predicated region
      $region45: #{tpu_custom_call.1} parent=5 // pred_check
        %p305 = pneg %p304
      $region46: #{tpu_custom_call.1} parent=5 // pred_check_branch
        %307 = sbr.rel (%p305) target = $region48
      $region47: #{tpu_custom_call.1} parent=5 // pred_region
        %s308 = ssub.s32 %s15, 2
        // Predicated region
        $region49: #{tpu_custom_call.1} parent=47 // pred_check
          %p309 = pneg %p140
        $region50: #{tpu_custom_call.1} parent=47 // pred_check_branch
          %311 = sbr.rel (%p309) target = $region52
        $region51: #{tpu_custom_call.1} parent=47 // pred_region
          %s312 = sand.u32 %s125, 1
          %s313 = scalar_lea.sflag [#allocation4], %s312
          %s314 = sand.u32 %s125, 1
          %s315 = smul.addr %s314, 8
          %s316 = scalar_lea.vmem [#allocation5], %s315
          %318 = dma.done %s313, 128
        $region52: #{tpu_custom_call.1} parent=47 // pred_fallthru
          _
      $region48: #{tpu_custom_call.1} parent=5 // pred_fallthru
        _
    $region6: #{tpu_custom_call.1} parent=1 // loop_footer
      %s19 = sadd.s32 1, %s15
    $region7: #{tpu_custom_call.1} parent=1 // loop_footer_branch
      %14 = sbr.rel target = $region3
    $region8: #{tpu_custom_call.1} parent=1 // loop_exit
      _
    %319 = vsyncpa [#allocation3], 1
    %s320 = scalar_lea.sflag [#allocation3], 1
    %321 = vsyncpa %s320, 1
    %322 = vsyncpa [#allocation4], 1
    %s323 = scalar_lea.sflag [#allocation4], 1
    %324 = vsyncpa %s323, 1

</llo_original>
